<compile_context>
chip_gen: v6e
topology: v6e:2x2x1
jax: 0.10.0
libtpu: 0.0.40
codegen_flags: <defaults>
</compile_context>

<pallas_src>
import functools

import jax
import jax.numpy as jnp
import numpy as np
from jax.experimental import pallas as pl
from jax.experimental.pallas import tpu as pltpu


def dnn_encoder_kernel(*refs, T, T_pad, Bn, E, reduce):
    """Row-tiled encoder.  x rows are ordered b*T_pad + t.

    refs (self-attention): x, w1, b1, w2, b2, w3cat, b3cat, wa2t, ba2, out
    refs (max/mean)      : x, w1, b1, w2, b2, w3,    b3,    out
    """
    if reduce == 'self-attention':
        (x_ref, w1_ref, b1_ref, w2_ref, b2_ref, w3_ref, b3_ref,
         wa2t_ref, ba2_ref, out_ref) = refs
    else:
        (x_ref, w1_ref, b1_ref, w2_ref, b2_ref, w3_ref, b3_ref, out_ref) = refs

    # ---- fc1 -> relu -> fc2 -> relu -> fc3[(+att1) fused] ------------------
    # x arrives fp32 (single HBM pass); cast to bf16 here for the MXU.
    x = x_ref[...].astype(jnp.bfloat16)
    h = jnp.dot(x, w1_ref[...], preferred_element_type=jnp.float32) + b1_ref[...]
    h = jnp.maximum(h, 0.0).astype(jnp.bfloat16)
    h = jnp.dot(h, w2_ref[...], preferred_element_type=jnp.float32) + b2_ref[...]
    h = jnp.maximum(h, 0.0).astype(jnp.bfloat16)
    y = jnp.dot(h, w3_ref[...], preferred_element_type=jnp.float32) + b3_ref[...]  # (R, E) or (R, 2E) f32

    ctx = y[:, :E]                      # fc3 output (prefix lane slice, no rotate)
    ctx3 = ctx.reshape(Bn, T_pad, E)    # sublane split (T_pad % 8 == 0)

    if T_pad != T:
        t_idx = jax.lax.broadcasted_iota(jnp.int32, (Bn, T_pad, 1), 1)
        valid = t_idx < T               # mask padded time rows
    else:
        valid = None

    if reduce == 'self-attention':
        # Columns [E:2E) of y are the fused fc3@att1 pre-activation.  tanh over
        # the full 2E slab costs the same number of EUP vreg pushes as over E
        # lanes (same vreg count); the ctx half is zeroed by wa2t's zero prefix,
        # avoiding an offset lane-slice.
        a1 = jnp.tanh(y)                                                          # (R, 2E)
        a2 = jnp.sum(a1 * wa2t_ref[...], axis=-1, keepdims=True) + ba2_ref[...]   # (R, 1)
        a2_3 = a2.reshape(Bn, T_pad, 1)
        a2_m = jnp.where(valid, a2_3, -jnp.inf) if valid is not None else a2_3
        # Per-sample max: same cost (one sublane reduce on the XLU, which has
        # slack), tiling-independent, and keeps den O(T) so the 1e-15 eps is
        # inert.  (torch's global max is a constant that cancels in num/den.)
        m = jnp.max(a2_m, axis=1, keepdims=True)                                  # (Bn, 1, 1)
        e3 = jnp.exp(a2_3 - m)                                                    # (Bn, T_pad, 1)
        if valid is not None:
            e3 = jnp.where(valid, e3, 0.0)
        num = jnp.sum(e3 * ctx3, axis=1)                                          # (Bn, E)
        den = jnp.sum(e3, axis=1)                                                 # (Bn, 1)
        out_ref[...] = num * pl.reciprocal(den + 1e-15, approx=True)
    elif reduce == 'max':
        if valid is not None:
            ctx3 = jnp.where(valid, ctx3, -jnp.inf)
        out_ref[...] = jnp.max(ctx3, axis=1)
    else:  # 'mean'
        if valid is not None:
            ctx3 = jnp.where(valid, ctx3, 0.0)
        out_ref[...] = jnp.sum(ctx3, axis=1) * (1.0 / T)


def _pad2(a, rows, cols):
    return jnp.pad(a, ((0, rows - a.shape[0]), (0, cols - a.shape[1])))


def dnn_encoder(x, params, reduce='self-attention', *, target_rows=8192):
    """x: (B, T, D) float32.  Returns (B, dim_enc) float32."""
    w1, b1, w2, b2, w3, b3, wa1, ba1, wa2, ba2 = params
    B, T, D = x.shape
    H = w1.shape[1]
    E = w3.shape[1]

    # ---- weight prep (zero padding of the hidden width is inert through relu) ----
    H_pad = -(-H // 128) * 128
    w1p = _pad2(w1, D, H_pad).astype(jnp.bfloat16)
    b1p = _pad2(b1, 1, H_pad)
    w2p = _pad2(w2, H_pad, H_pad).astype(jnp.bfloat16)
    b2p = _pad2(b2, 1, H_pad)

    if reduce == 'self-attention':
        # Fuse fc3 with the attention-score projection (single MXU pass, N=2E):
        #   (h@w3 + b3) @ wa1 + ba1 == h @ (w3@wa1) + (b3@wa1 + ba1)
        w3cat = jnp.concatenate([w3, w3 @ wa1], axis=1)            # (H, 2E)
        b3cat = jnp.concatenate([b3, b3 @ wa1 + ba1], axis=1)      # (1, 2E)
        w3p = _pad2(w3cat, H_pad, 2 * E).astype(jnp.bfloat16)
        b3p = b3cat
        # Zero prefix so tanh(ctx half) is weighted out of the score reduce.
        wa2t = jnp.concatenate([jnp.zeros((1, E), wa2.dtype), wa2.T], axis=1)   # (1, 2E)
        extra = (wa2t, ba2)
    else:
        w3p = _pad2(w3, H_pad, E).astype(jnp.bfloat16)
        b3p = b3
        extra = ()

    # ---- batch tiling: Bn_tile samples (Bn_tile*T_pad rows) per grid step ----
    T_pad = -(-T // 8) * 8
    # TODO(synk): for very long sequences (where even 8*T_pad rows of fp32
    # intermediates overflow v7x's 64 MiB VMEM) add an inner T-chunk loop with
    # an online-softmax accumulator instead of growing the row tile with T.
    bt = max(1, target_rows // T_pad)
    Bn_tile = max(8, (bt // 8) * 8)
    if B <= Bn_tile:
        if B >= 16:
            Bn_tile = -(-B // 16) * 8        # ~B/2 rounded up to a multiple of 8
        else:
            Bn_tile = B                      # tiny batch: single tile
    B_pad = -(-B // Bn_tile) * Bn_tile
    num_tiles = B_pad // Bn_tile
    if num_tiles > 1 and num_tiles % 2 == 1:
        B_pad += Bn_tile                     # even grid -> both v7x TCs get work
        num_tiles += 1
    rows = Bn_tile * T_pad

    # x stays fp32 (bf16 cast happens inside the kernel right after the load);
    # pad (only when needed) + reshape fuse into a single XLA op.
    if T_pad != T or B_pad != B:
        x_flat = jnp.pad(x, ((0, B_pad - B), (0, T_pad - T), (0, 0))) \
                    .reshape(B_pad * T_pad, D)
    else:
        x_flat = x.reshape(B * T, D)

    args = (x_flat, w1p, b1p, w2p, b2p, w3p, b3p) + extra

    def _const_map(ndim):
        return lambda i, _n=ndim: (0,) * _n

    in_specs = [pl.BlockSpec((rows, D), lambda i: (i, 0))]
    in_specs += [pl.BlockSpec(a.shape, _const_map(a.ndim)) for a in args[1:]]

    kernel = functools.partial(dnn_encoder_kernel,
                               T=T, T_pad=T_pad, Bn=Bn_tile, E=E, reduce=reduce)

    out = pl.pallas_call(
        kernel,
        grid=(num_tiles,),
        in_specs=in_specs,
        out_specs=pl.BlockSpec((Bn_tile, E), lambda i: (i, 0)),
        out_shape=jax.ShapeDtypeStruct((B_pad, E), jnp.float32),
        compiler_params=pltpu.CompilerParams(
            dimension_semantics=("parallel",),          # batch tiles are independent
            vmem_limit_bytes=48 * 1024 * 1024,          # fits v7x 64 MiB, > 32 MiB default
        ),
    )(*args)
    return out[:B]


def dnn_encoder_ref(x, params, reduce='self-attention'):
    """Pure-JAX reference matching the PyTorch forward exactly (fp32)."""
    w1, b1, w2, b2, w3, b3, wa1, ba1, wa2, ba2 = params
    xt = jnp.transpose(x, (1, 0, 2))                 # (T, B, D)
    h = jax.nn.relu(xt @ w1 + b1)
    h = jax.nn.relu(h @ w2 + b2)
    ctx = h @ w3 + b3                                # (T, B, E)
    if reduce == 'self-attention':
        a1 = jnp.tanh(ctx @ wa1 + ba1)
        a2 = (a1 @ wa2 + ba2)[..., 0]                # (T, B)
        alpha = jnp.exp(a2 - jnp.max(a2))
        alpha = alpha / (jnp.sum(alpha, axis=0, keepdims=True) + 1e-15)
        return jnp.sum(alpha[..., None] * ctx, axis=0)
    elif reduce == 'max':
        return jnp.max(ctx, axis=0)
    else:
        return jnp.mean(ctx, axis=0)


def _init_linear(key, fan_in, fan_out):
    """Deterministic nn.Linear-style init: U(-1/sqrt(fan_in), 1/sqrt(fan_in))."""
    kw, kb = jax.random.split(key)
    bound = 1.0 / float(np.sqrt(fan_in))
    w = jax.random.uniform(kw, (fan_in, fan_out), jnp.float32, -bound, bound)
    b = jax.random.uniform(kb, (1, fan_out), jnp.float32, -bound, bound)
    return w, b


if __name__ == "__main__":
    key = jax.random.PRNGKey(0)
    B, T = 2, 8            # batch, sequence length
    D, E, H = 32, 32, 200  # dim_input, dim_enc, hidden width (fixed at 200 in the module)

    keys = jax.random.split(key, 6)
    w1, b1 = _init_linear(keys[0], D, H)
    w2, b2 = _init_linear(keys[1], H, H)
    w3, b3 = _init_linear(keys[2], H, E)
    wa1, ba1 = _init_linear(keys[3], E, E)   # self-attention scoring layers
    wa2, ba2 = _init_linear(keys[4], E, 1)
    params = (w1, b1, w2, b2, w3, b3, wa1, ba1, wa2, ba2)

    x = jax.random.normal(keys[5], (B, T, D), jnp.float32)

    ok = True
    for reduce in ('self-attention', 'mean', 'max'):
        out = jax.block_until_ready(dnn_encoder(x, params, reduce=reduce))
        ref = jax.block_until_ready(dnn_encoder_ref(x, params, reduce=reduce))
        if not np.allclose(np.asarray(out), np.asarray(ref), rtol=3e-2, atol=3e-2):
            ok = False
            print(f"MISMATCH for reduce={reduce}: "
                  f"max abs err = {float(np.max(np.abs(np.asarray(out) - np.asarray(ref))))}")

    if ok:
        print("KERNEL_OK")
</pallas_src>

<mosaic_0001>
module attributes {stable_mosaic.version = 11 : i64} {
  func.func @dnn_encoder_kernel(%arg0: i32, %arg1: memref<16x32xf32, #tpu.memory_space<vmem>>, %arg2: memref<32x256xbf16, #tpu.memory_space<vmem>>, %arg3: memref<1x256xf32, #tpu.memory_space<vmem>>, %arg4: memref<256x256xbf16, #tpu.memory_space<vmem>>, %arg5: memref<1x256xf32, #tpu.memory_space<vmem>>, %arg6: memref<256x64xbf16, #tpu.memory_space<vmem>>, %arg7: memref<1x64xf32, #tpu.memory_space<vmem>>, %arg8: memref<1x64xf32, #tpu.memory_space<vmem>>, %arg9: memref<1x1xf32, #tpu.memory_space<vmem>>, %arg10: memref<2x32xf32, #tpu.memory_space<vmem>>) attributes {dimension_semantics = [#tpu.dimension_semantics<parallel>], iteration_bounds = array<i64: 1>, scalar_prefetch = 0 : i64, scratch_operands = 0 : i64, tpu.core_type = #tpu.core_type<tc>, window_params = [{transform_indices = @transform_0, window_bounds = array<i64: 16, 32>}, {pipeline_mode = #tpu.pipeline_mode<synchronous>, transform_indices = @transform_1, window_bounds = array<i64: 32, 256>}, {pipeline_mode = #tpu.pipeline_mode<synchronous>, transform_indices = @transform_2, window_bounds = array<i64: 1, 256>}, {pipeline_mode = #tpu.pipeline_mode<synchronous>, transform_indices = @transform_3, window_bounds = array<i64: 256, 256>}, {pipeline_mode = #tpu.pipeline_mode<synchronous>, transform_indices = @transform_4, window_bounds = array<i64: 1, 256>}, {pipeline_mode = #tpu.pipeline_mode<synchronous>, transform_indices = @transform_5, window_bounds = array<i64: 256, 64>}, {pipeline_mode = #tpu.pipeline_mode<synchronous>, transform_indices = @transform_6, window_bounds = array<i64: 1, 64>}, {pipeline_mode = #tpu.pipeline_mode<synchronous>, transform_indices = @transform_7, window_bounds = array<i64: 1, 64>}, {pipeline_mode = #tpu.pipeline_mode<synchronous>, transform_indices = @transform_8, window_bounds = array<i64: 1, 1>}, {transform_indices = @transform_9, window_bounds = array<i64: 2, 32>}]} {
    %c0 = arith.constant 0 : index
    %c0_0 = arith.constant 0 : index
    %0 = vector.load %arg1[%c0, %c0_0] : memref<16x32xf32, #tpu.memory_space<vmem>>, vector<16x32xf32>
    %1 = arith.truncf %0 : vector<16x32xf32> to vector<16x32xbf16>
    %c0_1 = arith.constant 0 : index
    %c0_2 = arith.constant 0 : index
    %2 = vector.load %arg2[%c0_1, %c0_2] : memref<32x256xbf16, #tpu.memory_space<vmem>>, vector<32x256xbf16>
    %cst = arith.constant dense<0.000000e+00> : vector<16x256xf32>
    %3 = tpu.matmul %1, %2, %cst {dimension_numbers = #tpu.dot_dimension_numbers<[1], [0], [0], [1], [0, 0, 1, 1], [], []>} : vector<16x32xbf16>, vector<32x256xbf16>, vector<16x256xf32> -> vector<16x256xf32>
    %c0_3 = arith.constant 0 : index
    %c0_4 = arith.constant 0 : index
    %4 = vector.load %arg3[%c0_3, %c0_4] : memref<1x256xf32, #tpu.memory_space<vmem>>, vector<1x256xf32>
    %5 = vector.broadcast %4 : vector<1x256xf32> to vector<16x256xf32>
    %6 = arith.addf %3, %5 : vector<16x256xf32>
    %cst_5 = arith.constant 0.000000e+00 : f32
    %7 = vector.broadcast %cst_5 : f32 to vector<16x256xf32>
    %8 = arith.maximumf %6, %7 : vector<16x256xf32>
    %9 = arith.truncf %8 : vector<16x256xf32> to vector<16x256xbf16>
    %c0_6 = arith.constant 0 : index
    %c0_7 = arith.constant 0 : index
    %10 = vector.load %arg4[%c0_6, %c0_7] : memref<256x256xbf16, #tpu.memory_space<vmem>>, vector<256x256xbf16>
    %cst_8 = arith.constant dense<0.000000e+00> : vector<16x256xf32>
    %11 = tpu.matmul %9, %10, %cst_8 {dimension_numbers = #tpu.dot_dimension_numbers<[1], [0], [0], [1], [0, 0, 1, 1], [], []>} : vector<16x256xbf16>, vector<256x256xbf16>, vector<16x256xf32> -> vector<16x256xf32>
    %c0_9 = arith.constant 0 : index
    %c0_10 = arith.constant 0 : index
    %12 = vector.load %arg5[%c0_9, %c0_10] : memref<1x256xf32, #tpu.memory_space<vmem>>, vector<1x256xf32>
    %13 = vector.broadcast %12 : vector<1x256xf32> to vector<16x256xf32>
    %14 = arith.addf %11, %13 : vector<16x256xf32>
    %cst_11 = arith.constant 0.000000e+00 : f32
    %15 = vector.broadcast %cst_11 : f32 to vector<16x256xf32>
    %16 = arith.maximumf %14, %15 : vector<16x256xf32>
    %17 = arith.truncf %16 : vector<16x256xf32> to vector<16x256xbf16>
    %c0_12 = arith.constant 0 : index
    %c0_13 = arith.constant 0 : index
    %18 = vector.load %arg6[%c0_12, %c0_13] : memref<256x64xbf16, #tpu.memory_space<vmem>>, vector<256x64xbf16>
    %cst_14 = arith.constant dense<0.000000e+00> : vector<16x64xf32>
    %19 = tpu.matmul %17, %18, %cst_14 {dimension_numbers = #tpu.dot_dimension_numbers<[1], [0], [0], [1], [0, 0, 1, 1], [], []>} : vector<16x256xbf16>, vector<256x64xbf16>, vector<16x64xf32> -> vector<16x64xf32>
    %c0_15 = arith.constant 0 : index
    %c0_16 = arith.constant 0 : index
    %20 = vector.load %arg7[%c0_15, %c0_16] : memref<1x64xf32, #tpu.memory_space<vmem>>, vector<1x64xf32>
    %21 = vector.broadcast %20 : vector<1x64xf32> to vector<16x64xf32>
    %22 = arith.addf %19, %21 : vector<16x64xf32>
    %23 = vector.extract_strided_slice %22 {offsets = [0, 0], sizes = [16, 32], strides = [1, 1]} : vector<16x64xf32> to vector<16x32xf32>
    %24 = vector.shape_cast %23 : vector<16x32xf32> to vector<2x8x32xf32>
    %25 = math.tanh %22 : vector<16x64xf32>
    %c0_17 = arith.constant 0 : index
    %c0_18 = arith.constant 0 : index
    %26 = vector.load %arg8[%c0_17, %c0_18] : memref<1x64xf32, #tpu.memory_space<vmem>>, vector<1x64xf32>
    %27 = vector.broadcast %26 : vector<1x64xf32> to vector<16x64xf32>
    %28 = arith.mulf %25, %27 : vector<16x64xf32>
    %cst_19 = arith.constant dense<0.000000e+00> : vector<16xf32>
    %29 = vector.multi_reduction <add>, %28, %cst_19 [1] : vector<16x64xf32> to vector<16xf32>
    %30 = vector.shape_cast %29 : vector<16xf32> to vector<16x1xf32>
    %c0_20 = arith.constant 0 : index
    %c0_21 = arith.constant 0 : index
    %31 = vector.load %arg9[%c0_20, %c0_21] : memref<1x1xf32, #tpu.memory_space<vmem>>, vector<1x1xf32>
    %32 = vector.broadcast %31 : vector<1x1xf32> to vector<16x1xf32>
    %33 = arith.addf %30, %32 : vector<16x1xf32>
    %34 = vector.shape_cast %33 : vector<16x1xf32> to vector<2x8x1xf32>
    %cst_22 = arith.constant dense<0xFF800000> : vector<2x1xf32>
    %35 = vector.multi_reduction <maximumf>, %34, %cst_22 [1] : vector<2x8x1xf32> to vector<2x1xf32>
    %36 = vector.shape_cast %35 : vector<2x1xf32> to vector<2x1x1xf32>
    %37 = vector.broadcast %36 : vector<2x1x1xf32> to vector<2x8x1xf32>
    %38 = arith.subf %34, %37 : vector<2x8x1xf32>
    %39 = math.exp %38 : vector<2x8x1xf32>
    %40 = vector.broadcast %39 : vector<2x8x1xf32> to vector<2x8x32xf32>
    %41 = arith.mulf %40, %24 : vector<2x8x32xf32>
    %cst_23 = arith.constant dense<0.000000e+00> : vector<2x32xf32>
    %42 = vector.multi_reduction <add>, %41, %cst_23 [1] : vector<2x8x32xf32> to vector<2x32xf32>
    %cst_24 = arith.constant dense<0.000000e+00> : vector<2x1xf32>
    %43 = vector.multi_reduction <add>, %39, %cst_24 [1] : vector<2x8x1xf32> to vector<2x1xf32>
    %cst_25 = arith.constant 1.000000e-15 : f32
    %44 = vector.broadcast %cst_25 : f32 to vector<2x1xf32>
    %45 = arith.addf %43, %44 : vector<2x1xf32>
    %46 = tpu.reciprocal %45 {approx = true} : vector<2x1xf32> -> vector<2x1xf32>
    %47 = vector.broadcast %46 : vector<2x1xf32> to vector<2x32xf32>
    %48 = arith.mulf %42, %47 : vector<2x32xf32>
    %c0_26 = arith.constant 0 : index
    %c0_27 = arith.constant 0 : index
    %49 = vector.load %arg10[%c0_26, %c0_27] : memref<2x32xf32, #tpu.memory_space<vmem>>, vector<2x32xf32>
    tpu.vector_store %arg10[%c0_26, %c0_27], %48 {strides = array<i32>} : memref<2x32xf32, #tpu.memory_space<vmem>>, vector<2x32xf32>,
    return
  }
  func.func @transform_0(%arg0: i32) -> (i32, i32) {
    %c0_i32 = arith.constant 0 : i32
    %c0_i32_0 = arith.constant 0 : i32
    return %arg0, %c0_i32 : i32, i32
  }
  func.func @transform_1(%arg0: i32) -> (i32, i32) {
    %c0_i32 = arith.constant 0 : i32
    %c0_i32_0 = arith.constant 0 : i32
    %c0_i32_1 = arith.constant 0 : i32
    return %c0_i32, %c0_i32_0 : i32, i32
  }
  func.func @transform_2(%arg0: i32) -> (i32, i32) {
    %c0_i32 = arith.constant 0 : i32
    %c0_i32_0 = arith.constant 0 : i32
    %c0_i32_1 = arith.constant 0 : i32
    return %c0_i32, %c0_i32_0 : i32, i32
  }
  func.func @transform_3(%arg0: i32) -> (i32, i32) {
    %c0_i32 = arith.constant 0 : i32
    %c0_i32_0 = arith.constant 0 : i32
    %c0_i32_1 = arith.constant 0 : i32
    return %c0_i32, %c0_i32_0 : i32, i32
  }
  func.func @transform_4(%arg0: i32) -> (i32, i32) {
    %c0_i32 = arith.constant 0 : i32
    %c0_i32_0 = arith.constant 0 : i32
    %c0_i32_1 = arith.constant 0 : i32
    return %c0_i32, %c0_i32_0 : i32, i32
  }
  func.func @transform_5(%arg0: i32) -> (i32, i32) {
    %c0_i32 = arith.constant 0 : i32
    %c0_i32_0 = arith.constant 0 : i32
    %c0_i32_1 = arith.constant 0 : i32
    return %c0_i32, %c0_i32_0 : i32, i32
  }
  func.func @transform_6(%arg0: i32) -> (i32, i32) {
    %c0_i32 = arith.constant 0 : i32
    %c0_i32_0 = arith.constant 0 : i32
    %c0_i32_1 = arith.constant 0 : i32
    return %c0_i32, %c0_i32_0 : i32, i32
  }
  func.func @transform_7(%arg0: i32) -> (i32, i32) {
    %c0_i32 = arith.constant 0 : i32
    %c0_i32_0 = arith.constant 0 : i32
    %c0_i32_1 = arith.constant 0 : i32
    return %c0_i32, %c0_i32_0 : i32, i32
  }
  func.func @transform_8(%arg0: i32) -> (i32, i32) {
    %c0_i32 = arith.constant 0 : i32
    %c0_i32_0 = arith.constant 0 : i32
    %c0_i32_1 = arith.constant 0 : i32
    return %c0_i32, %c0_i32_0 : i32, i32
  }
  func.func @transform_9(%arg0: i32) -> (i32, i32) {
    %c0_i32 = arith.constant 0 : i32
    %c0_i32_0 = arith.constant 0 : i32
    return %arg0, %c0_i32 : i32, i32
  }
}

</mosaic_0001>

<llo_original>
// kernel: tpu_custom_call.1
$region0: #{tpu_custom_call.1}
  #allocation0 [shape = 'u32[]', space=smem, size = 0x4, offset = 0x4, fixed_abs, tag = 'smem constant byte address 0x4 - core index']
  #allocation1 [shape = 'u32[144,128]{1,0:T(1,128)}', space=vmem, size = 0x12000, scoped, tag = 'internal scratch']
  #allocation2 [shape = 'f32[1,1]{1,0:T(1,128)S(1)}', space=vmem, size = 0x200, scoped, tag = 'scoped memory for tpu_custom_call.1']
  %s0 = inlined_call_operand.vmem [shape: f32[16,32], index: 0, kind: input, shape index: {}]
  %s1 = inlined_call_operand.vmem [shape: bf16[32,256], index: 1, kind: input, shape index: {}]
  %s2 = inlined_call_operand.vmem [shape: f32[1,256], index: 2, kind: input, shape index: {}]
  %s3 = inlined_call_operand.hbm [shape: bf16[256,256], index: 3, kind: input, shape index: {}]
  %s4 = inlined_call_operand.vmem [shape: f32[1,256], index: 4, kind: input, shape index: {}]
  %s5 = inlined_call_operand.vmem [shape: bf16[256,64], index: 5, kind: input, shape index: {}]
  %s6 = inlined_call_operand.vmem [shape: f32[1,64], index: 6, kind: input, shape index: {}]
  %s7 = inlined_call_operand.vmem [shape: f32[1,64], index: 7, kind: input, shape index: {}]
  %s8 = inlined_call_operand.<no memory space> [shape: f32[1,1], index: 8, kind: input, shape index: {}]
  %s9 = inlined_call_operand.hbm [shape: f32[2,32], index: 9, kind: output, shape index: {}]
  %s10 = sld [smem:[#allocation0]]
  $region50: #{tpu_custom_call.1} parent=0
    _
  %s12 = ssub.s32 1, %s10
  %s13 = scalar_select 0, %s12, %s10
  %v14 = vstv %s8
  %15 = vst [vmem:[#allocation2] sm:$0x1] %v14
  $region1: #{tpu_custom_call.1} parent=0
    #allocation3 [shape = 'u8[131072]{0}', space=vmem, size = 0x20000, scoped, tag = 'input window, operand 3, single buffered']
    #allocation4 [shape = 's32[1]{0}', space=sflag, size = 0x4, scoped, tag = 'scoped memory for tpu_custom_call.1']
    #allocation5 [shape = 's32[1]{0}', space=sflag, size = 0x4, scoped, tag = 'scoped memory for tpu_custom_call.1']
    #allocation6 [shape = 'u8[1024]{0}', space=vmem, size = 0x400, scoped, tag = 'output window, operand 0, single buffered']
    %16 = vsyncpa [#allocation4], 0
    %17 = vsyncpa [#allocation5], 0
    // Predicated region
    $region2: #{tpu_custom_call.1} parent=1 // pred_check
      _
    $region3: #{tpu_custom_call.1} parent=1 // pred_check_branch
      %19 = sbr.rel (0) target = $region5
    $region4: #{tpu_custom_call.1} parent=1 // pred_region
      _
    $region5: #{tpu_custom_call.1} parent=1 // pred_fallthru
      _
    // Predicated region
    $region6: #{tpu_custom_call.1} parent=1 // pred_check
      _
    $region7: #{tpu_custom_call.1} parent=1 // pred_check_branch
      %21 = sbr.rel (0) target = $region9
    $region8: #{tpu_custom_call.1} parent=1 // pred_region
      _
    $region9: #{tpu_custom_call.1} parent=1 // pred_fallthru
      _
    // Predicated region
    $region10: #{tpu_custom_call.1} parent=1 // pred_check
      _
    $region11: #{tpu_custom_call.1} parent=1 // pred_check_branch
      %23 = sbr.rel (0) target = $region13
    $region12: #{tpu_custom_call.1} parent=1 // pred_region
      _
    $region13: #{tpu_custom_call.1} parent=1 // pred_fallthru
      _
    // Predicated region
    $region14: #{tpu_custom_call.1} parent=1 // pred_check
      _
    $region15: #{tpu_custom_call.1} parent=1 // pred_check_branch
      %25 = sbr.rel (0) target = $region17
    $region16: #{tpu_custom_call.1} parent=1 // pred_region
      %s27 = ssub.s32 4096, 4096
      %28 = vsyncadd [#allocation4], %s27
      %s29 = sshll.u32 [#allocation3], 4
      %s30 = int_to_ptr.vmem [resolvable:$true] %s29
      %35 = dma.hbm_to_vmem [thread:$0]  %s3, 4096, %s30, [#allocation4], 128, 128, 8
    $region17: #{tpu_custom_call.1} parent=1 // pred_fallthru
      _
    // Predicated region
    $region18: #{tpu_custom_call.1} parent=1 // pred_check
      _
    $region19: #{tpu_custom_call.1} parent=1 // pred_check_branch
      %37 = sbr.rel (0) target = $region21
    $region20: #{tpu_custom_call.1} parent=1 // pred_region
      _
    $region21: #{tpu_custom_call.1} parent=1 // pred_fallthru
      _
    // Predicated region
    $region22: #{tpu_custom_call.1} parent=1 // pred_check
      _
    $region23: #{tpu_custom_call.1} parent=1 // pred_check_branch
      %39 = sbr.rel (0) target = $region25
    $region24: #{tpu_custom_call.1} parent=1 // pred_region
      _
    $region25: #{tpu_custom_call.1} parent=1 // pred_fallthru
      _
    // Predicated region
    $region26: #{tpu_custom_call.1} parent=1 // pred_check
      _
    $region27: #{tpu_custom_call.1} parent=1 // pred_check_branch
      %41 = sbr.rel (0) target = $region29
    $region28: #{tpu_custom_call.1} parent=1 // pred_region
      _
    $region29: #{tpu_custom_call.1} parent=1 // pred_fallthru
      _
    // Predicated region
    $region30: #{tpu_custom_call.1} parent=1 // pred_check
      _
    $region31: #{tpu_custom_call.1} parent=1 // pred_check_branch
      %43 = sbr.rel (0) target = $region33
    $region32: #{tpu_custom_call.1} parent=1 // pred_region
      _
    $region33: #{tpu_custom_call.1} parent=1 // pred_fallthru
      _
    // Predicated region
    $region34: #{tpu_custom_call.1} parent=1 // pred_check
      _
    $region35: #{tpu_custom_call.1} parent=1 // pred_check_branch
      %45 = sbr.rel (0) target = $region37
    $region36: #{tpu_custom_call.1} parent=1 // pred_region
      _
    $region37: #{tpu_custom_call.1} parent=1 // pred_fallthru
      _
    // Predicated region
    $region38: #{tpu_custom_call.1} parent=1 // pred_check
      _
    $region39: #{tpu_custom_call.1} parent=1 // pred_check_branch
      %47 = sbr.rel (0) target = $region41
    $region40: #{tpu_custom_call.1} parent=1 // pred_region
      %48 = dma.done [#allocation4], 4096
    $region41: #{tpu_custom_call.1} parent=1 // pred_fallthru
      _
    %v50 = vld [vmem:[%s0] sm:$0xff]
    %v51 = vld [vmem:[%s0 + $0x8] sm:$0xff]
    %v52 = vpack.c.bf16 %v51, %v50
    %v53 = vld [vmem:[%s1] sm:$0xff]
    %v54 = vld [vmem:[%s1 + $0x8] sm:$0xff]
    %v55 = vld [vmem:[%s1 + $0x10] sm:$0xff]
    %v56 = vld [vmem:[%s1 + $0x18] sm:$0xff]
    %v57 = vld [vmem:[%s2] sm:$0x3]
    %v59 = vlaneseq
    %v60 = vshrl.u32 %v59, 7
    %v61 = vsub.s32 0, %v60
    %v62 = vrot.slane %v57, %v61
    %v63 = vlaneseq
    %v64 = vshrl.u32 %v63, 7
    %v65 = vsub.s32 1, %v64
    %v66 = vrot.slane %v57, %v65
    %v73 = vunpack.c.l.b16 %v53
    %v74 = vunpack.c.h.b16 %v53
    %v75 = vunpack.c.l.b16 %v54
    %v76 = vunpack.c.h.b16 %v54
    %v77 = vunpack.c.l.b16 %v55
    %v78 = vunpack.c.h.b16 %v55
    %v79 = vunpack.c.l.b16 %v56
    %v80 = vunpack.c.h.b16 %v56
    %v81 = vpack.c.b16 %v75, %v73
    %v82 = vpack.c.b16 %v76, %v74
    %v83 = vpack.c.b16 %v79, %v77
    %v84 = vpack.c.b16 %v80, %v78
    %vm89 = vcmask 261120
    %v91 = vsel %vm89, %v52, 0
    %93 = vmatprep.subr.bf16.mxu0 0
    %94 = vmatpush1.bf16.msra.mxu0 0
    %95 = vmatprep.subr.bf16.mxu0 0
    %96 = vmatpush1.bf16.msra.mxu0 0
    %97 = vmatprep.subr.bf16.mxu0 0
    %98 = vmatpush1.bf16.msra.mxu0 0
    %99 = vmatprep.subr.bf16.mxu0 0
    %100 = vmatpush1.bf16.msra.mxu0 0
    %101 = vmatprep.subr.bf16.mxu0 0
    %102 = vmatpush1.bf16.msra.mxu0 0
    %103 = vmatprep.subr.bf16.mxu0 0
    %104 = vmatpush1.bf16.msra.mxu0 0
    %105 = vmatprep.subr.bf16.mxu0 %v84
    %106 = vmatpush1.bf16.msra.mxu0 %v83
    %107 = vmatprep.subr.bf16.mxu0 %v82
    %108 = vmatpush1.bf16.msra.mxu0 %v81
    %109 = vmatprep.subr.bf16.mxu0 0
    %110 = vmatpush2.bf16.msra.mxu0 0
    %111 = vmatprep.subr.bf16.mxu0 0
    %112 = vmatpush2.bf16.msra.mxu0 0
    %113 = vmatprep.subr.bf16.mxu0 0
    %114 = vmatpush2.bf16.msra.mxu0 0
    %115 = vmatprep.subr.bf16.mxu0 0
    %116 = vmatpush2.bf16.msra.mxu0 0
    %117 = vmatprep.subr.bf16.mxu0 0
    %118 = vmatpush2.bf16.msra.mxu0 0
    %119 = vmatprep.subr.bf16.mxu0 0
    %120 = vmatpush2.bf16.msra.mxu0 0
    %121 = vmatprep.subr.bf16.mxu0 0
    %122 = vmatpush2.bf16.msra.mxu0 0
    %123 = vmatprep.subr.bf16.mxu0 0
    %124 = vmatpush2.bf16.msra.mxu0 0
    %125 = vmatprep.mubr.bf16.mxu0 0
    %126 = vmatmul.mubr.bf16.gmra.mxu0 %v91
    %v127 = vpop.f32.mrf.mxu0
    %v128 = vadd.f32 %v62, %v127
    %v129 = vpop.f32.mrf.mxu0
    %v130 = vadd.f32 %v66, %v129
    %v131 = vpop.f32.mrf.mxu0
    %v132 = vadd.f32 %v62, %v131
    %v133 = vpop.f32.mrf.mxu0
    %v134 = vadd.f32 %v66, %v133
    %135 = vdwg.mxu0
    %v136 = vmax.f32 %v128, 0.0
    %v137 = vmax.f32 %v130, 0.0
    %v138 = vmax.f32 %v132, 0.0
    %v139 = vmax.f32 %v134, 0.0
    %v140 = vpack.c.bf16 %v138, %v136
    %v141 = vpack.c.bf16 %v139, %v137
    %v142 = vld [vmem:[#allocation3] sm:$0xff]
    %v143 = vld [vmem:[#allocation3 + $0x8] sm:$0xff]
    %v144 = vld [vmem:[#allocation3 + $0x10] sm:$0xff]
    %v145 = vld [vmem:[#allocation3 + $0x18] sm:$0xff]
    %v146 = vld [vmem:[#allocation3 + $0x20] sm:$0xff]
    %v147 = vld [vmem:[#allocation3 + $0x28] sm:$0xff]
    %v148 = vld [vmem:[#allocation3 + $0x30] sm:$0xff]
    %v149 = vld [vmem:[#allocation3 + $0x38] sm:$0xff]
    %v150 = vld [vmem:[#allocation3 + $0x40] sm:$0xff]
    %v151 = vld [vmem:[#allocation3 + $0x48] sm:$0xff]
    %v152 = vld [vmem:[#allocation3 + $0x50] sm:$0xff]
    %v153 = vld [vmem:[#allocation3 + $0x58] sm:$0xff]
    %v154 = vld [vmem:[#allocation3 + $0x60] sm:$0xff]
    %v155 = vld [vmem:[#allocation3 + $0x68] sm:$0xff]
    %v156 = vld [vmem:[#allocation3 + $0x70] sm:$0xff]
    %v157 = vld [vmem:[#allocation3 + $0x78] sm:$0xff]
    %v158 = vld [vmem:[#allocation3 + $0x80] sm:$0xff]
    %v159 = vld [vmem:[#allocation3 + $0x88] sm:$0xff]
    %v160 = vld [vmem:[#allocation3 + $0x90] sm:$0xff]
    %v161 = vld [vmem:[#allocation3 + $0x98] sm:$0xff]
    %v162 = vld [vmem:[#allocation3 + $0xa0] sm:$0xff]
    %v163 = vld [vmem:[#allocation3 + $0xa8] sm:$0xff]
    %v164 = vld [vmem:[#allocation3 + $0xb0] sm:$0xff]
    %v165 = vld [vmem:[#allocation3 + $0xb8] sm:$0xff]
    %v166 = vld [vmem:[#allocation3 + $0xc0] sm:$0xff]
    %v167 = vld [vmem:[#allocation3 + $0xc8] sm:$0xff]
    %v168 = vld [vmem:[#allocation3 + $0xd0] sm:$0xff]
    %v169 = vld [vmem:[#allocation3 + $0xd8] sm:$0xff]
    %v170 = vld [vmem:[#allocation3 + $0xe0] sm:$0xff]
    %v171 = vld [vmem:[#allocation3 + $0xe8] sm:$0xff]
    %v172 = vld [vmem:[#allocation3 + $0xf0] sm:$0xff]
    %v173 = vld [vmem:[#allocation3 + $0xf8] sm:$0xff]
    %v174 = vld [vmem:[%s4] sm:$0x3]
    %v176 = vlaneseq
    %v177 = vshrl.u32 %v176, 7
    %v178 = vsub.s32 0, %v177
    %v179 = vrot.slane %v174, %v178
    %v180 = vlaneseq
    %v181 = vshrl.u32 %v180, 7
    %v182 = vsub.s32 1, %v181
    %v183 = vrot.slane %v174, %v182
    %v218 = vunpack.c.l.b16 %v142
    %v219 = vunpack.c.h.b16 %v142
    %v220 = vunpack.c.l.b16 %v143
    %v221 = vunpack.c.h.b16 %v143
    %v222 = vunpack.c.l.b16 %v144
    %v223 = vunpack.c.h.b16 %v144
    %v224 = vunpack.c.l.b16 %v145
    %v225 = vunpack.c.h.b16 %v145
    %v226 = vunpack.c.l.b16 %v146
    %v227 = vunpack.c.h.b16 %v146
    %v228 = vunpack.c.l.b16 %v147
    %v229 = vunpack.c.h.b16 %v147
    %v230 = vunpack.c.l.b16 %v148
    %v231 = vunpack.c.h.b16 %v148
    %v232 = vunpack.c.l.b16 %v149
    %v233 = vunpack.c.h.b16 %v149
    %v234 = vunpack.c.l.b16 %v150
    %v235 = vunpack.c.h.b16 %v150
    %v236 = vunpack.c.l.b16 %v151
    %v237 = vunpack.c.h.b16 %v151
    %v238 = vunpack.c.l.b16 %v152
    %v239 = vunpack.c.h.b16 %v152
    %v240 = vunpack.c.l.b16 %v153
    %v241 = vunpack.c.h.b16 %v153
    %v242 = vunpack.c.l.b16 %v154
    %v243 = vunpack.c.h.b16 %v154
    %v244 = vunpack.c.l.b16 %v155
    %v245 = vunpack.c.h.b16 %v155
    %v246 = vunpack.c.l.b16 %v156
    %v247 = vunpack.c.h.b16 %v156
    %v248 = vunpack.c.l.b16 %v157
    %v249 = vunpack.c.h.b16 %v157
    %v250 = vunpack.c.l.b16 %v158
    %v251 = vunpack.c.h.b16 %v158
    %v252 = vunpack.c.l.b16 %v159
    %v253 = vunpack.c.h.b16 %v159
    %v254 = vunpack.c.l.b16 %v160
    %v255 = vunpack.c.h.b16 %v160
    %v256 = vunpack.c.l.b16 %v161
    %v257 = vunpack.c.h.b16 %v161
    %v258 = vunpack.c.l.b16 %v162
    %v259 = vunpack.c.h.b16 %v162
    %v260 = vunpack.c.l.b16 %v163
    %v261 = vunpack.c.h.b16 %v163
    %v262 = vunpack.c.l.b16 %v164
    %v263 = vunpack.c.h.b16 %v164
    %v264 = vunpack.c.l.b16 %v165
    %v265 = vunpack.c.h.b16 %v165
    %v266 = vunpack.c.l.b16 %v166
    %v267 = vunpack.c.h.b16 %v166
    %v268 = vunpack.c.l.b16 %v167
    %v269 = vunpack.c.h.b16 %v167
    %v270 = vunpack.c.l.b16 %v168
    %v271 = vunpack.c.h.b16 %v168
    %v272 = vunpack.c.l.b16 %v169
    %v273 = vunpack.c.h.b16 %v169
    %v274 = vunpack.c.l.b16 %v170
    %v275 = vunpack.c.h.b16 %v170
    %v276 = vunpack.c.l.b16 %v171
    %v277 = vunpack.c.h.b16 %v171
    %v278 = vunpack.c.l.b16 %v172
    %v279 = vunpack.c.h.b16 %v172
    %v280 = vunpack.c.l.b16 %v173
    %v281 = vunpack.c.h.b16 %v173
    %v282 = vpack.c.b16 %v220, %v218
    %v283 = vpack.c.b16 %v221, %v219
    %v284 = vpack.c.b16 %v224, %v222
    %v285 = vpack.c.b16 %v225, %v223
    %v286 = vpack.c.b16 %v228, %v226
    %v287 = vpack.c.b16 %v229, %v227
    %v288 = vpack.c.b16 %v232, %v230
    %v289 = vpack.c.b16 %v233, %v231
    %v290 = vpack.c.b16 %v236, %v234
    %v291 = vpack.c.b16 %v237, %v235
    %v292 = vpack.c.b16 %v240, %v238
    %v293 = vpack.c.b16 %v241, %v239
    %v294 = vpack.c.b16 %v244, %v242
    %v295 = vpack.c.b16 %v245, %v243
    %v296 = vpack.c.b16 %v248, %v246
    %v297 = vpack.c.b16 %v249, %v247
    %v298 = vpack.c.b16 %v252, %v250
    %v299 = vpack.c.b16 %v253, %v251
    %v300 = vpack.c.b16 %v256, %v254
    %v301 = vpack.c.b16 %v257, %v255
    %v302 = vpack.c.b16 %v260, %v258
    %v303 = vpack.c.b16 %v261, %v259
    %v304 = vpack.c.b16 %v264, %v262
    %v305 = vpack.c.b16 %v265, %v263
    %v306 = vpack.c.b16 %v268, %v266
    %v307 = vpack.c.b16 %v269, %v267
    %v308 = vpack.c.b16 %v272, %v270
    %v309 = vpack.c.b16 %v273, %v271
    %v310 = vpack.c.b16 %v276, %v274
    %v311 = vpack.c.b16 %v277, %v275
    %v312 = vpack.c.b16 %v280, %v278
    %v313 = vpack.c.b16 %v281, %v279
    %346 = vmatprep.subr.bf16.mxu0 %v297
    %347 = vmatpush1.bf16.msra.mxu0 %v296
    %348 = vmatprep.subr.bf16.mxu0 %v295
    %349 = vmatpush1.bf16.msra.mxu0 %v294
    %350 = vmatprep.subr.bf16.mxu0 %v293
    %351 = vmatpush1.bf16.msra.mxu0 %v292
    %352 = vmatprep.subr.bf16.mxu0 %v291
    %353 = vmatpush1.bf16.msra.mxu0 %v290
    %354 = vmatprep.subr.bf16.mxu0 %v289
    %355 = vmatpush1.bf16.msra.mxu0 %v288
    %356 = vmatprep.subr.bf16.mxu0 %v287
    %357 = vmatpush1.bf16.msra.mxu0 %v286
    %358 = vmatprep.subr.bf16.mxu0 %v285
    %359 = vmatpush1.bf16.msra.mxu0 %v284
    %360 = vmatprep.subr.bf16.mxu0 %v283
    %361 = vmatpush1.bf16.msra.mxu0 %v282
    %362 = vmatprep.subr.bf16.mxu0 %v313
    %363 = vmatpush2.bf16.msra.mxu0 %v312
    %364 = vmatprep.subr.bf16.mxu0 %v311
    %365 = vmatpush2.bf16.msra.mxu0 %v310
    %366 = vmatprep.subr.bf16.mxu0 %v309
    %367 = vmatpush2.bf16.msra.mxu0 %v308
    %368 = vmatprep.subr.bf16.mxu0 %v307
    %369 = vmatpush2.bf16.msra.mxu0 %v306
    %370 = vmatprep.subr.bf16.mxu0 %v305
    %371 = vmatpush2.bf16.msra.mxu0 %v304
    %372 = vmatprep.subr.bf16.mxu0 %v303
    %373 = vmatpush2.bf16.msra.mxu0 %v302
    %374 = vmatprep.subr.bf16.mxu0 %v301
    %375 = vmatpush2.bf16.msra.mxu0 %v300
    %376 = vmatprep.subr.bf16.mxu0 %v299
    %377 = vmatpush2.bf16.msra.mxu0 %v298
    %378 = vmatprep.mubr.bf16.mxu0 %v141
    %379 = vmatmul.mubr.bf16.gmra.mxu0 %v140
    %v380 = vpop.f32.mrf.mxu0
    %v381 = vadd.f32 %v179, %v380
    %v382 = vpop.f32.mrf.mxu0
    %v383 = vadd.f32 %v183, %v382
    %v384 = vpop.f32.mrf.mxu0
    %v385 = vadd.f32 %v179, %v384
    %v386 = vpop.f32.mrf.mxu0
    %v387 = vadd.f32 %v183, %v386
    %388 = vdwg.mxu0
    %v389 = vmax.f32 %v381, 0.0
    %v390 = vmax.f32 %v383, 0.0
    %v391 = vmax.f32 %v385, 0.0
    %v392 = vmax.f32 %v387, 0.0
    %v393 = vpack.c.bf16 %v391, %v389
    %v394 = vpack.c.bf16 %v392, %v390
    %v395 = vld [vmem:[%s5] sm:$0xf]
    %v396 = vld [vmem:[%s5 + $0x4] sm:$0xf]
    %v397 = vld [vmem:[%s5 + $0x8] sm:$0xf]
    %v398 = vld [vmem:[%s5 + $0xc] sm:$0xf]
    %v399 = vld [vmem:[%s5 + $0x10] sm:$0xf]
    %v400 = vld [vmem:[%s5 + $0x14] sm:$0xf]
    %v401 = vld [vmem:[%s5 + $0x18] sm:$0xf]
    %v402 = vld [vmem:[%s5 + $0x1c] sm:$0xf]
    %v403 = vld [vmem:[%s5 + $0x20] sm:$0xf]
    %v404 = vld [vmem:[%s5 + $0x24] sm:$0xf]
    %v405 = vld [vmem:[%s5 + $0x28] sm:$0xf]
    %v406 = vld [vmem:[%s5 + $0x2c] sm:$0xf]
    %v407 = vld [vmem:[%s5 + $0x30] sm:$0xf]
    %v408 = vld [vmem:[%s5 + $0x34] sm:$0xf]
    %v409 = vld [vmem:[%s5 + $0x38] sm:$0xf]
    %v410 = vld [vmem:[%s5 + $0x3c] sm:$0xf]
    %v411 = vld [vmem:[%s5 + $0x40] sm:$0xf]
    %v412 = vld [vmem:[%s5 + $0x44] sm:$0xf]
    %v413 = vld [vmem:[%s5 + $0x48] sm:$0xf]
    %v414 = vld [vmem:[%s5 + $0x4c] sm:$0xf]
    %v415 = vld [vmem:[%s5 + $0x50] sm:$0xf]
    %v416 = vld [vmem:[%s5 + $0x54] sm:$0xf]
    %v417 = vld [vmem:[%s5 + $0x58] sm:$0xf]
    %v418 = vld [vmem:[%s5 + $0x5c] sm:$0xf]
    %v419 = vld [vmem:[%s5 + $0x60] sm:$0xf]
    %v420 = vld [vmem:[%s5 + $0x64] sm:$0xf]
    %v421 = vld [vmem:[%s5 + $0x68] sm:$0xf]
    %v422 = vld [vmem:[%s5 + $0x6c] sm:$0xf]
    %v423 = vld [vmem:[%s5 + $0x70] sm:$0xf]
    %v424 = vld [vmem:[%s5 + $0x74] sm:$0xf]
    %v425 = vld [vmem:[%s5 + $0x78] sm:$0xf]
    %v426 = vld [vmem:[%s5 + $0x7c] sm:$0xf]
    %v427 = vld [vmem:[%s6] sm:$0x1]
    %v429 = vlaneseq
    %v430 = vshrl.u32 %v429, 7
    %v431 = vsub.s32 0, %v430
    %v432 = vrot.slane %v427, %v431
    %v466 = vunpack.c.l.b16 %v395
    %v467 = vunpack.c.l.b16 %v396
    %v468 = vunpack.c.l.b16 %v397
    %v469 = vunpack.c.l.b16 %v398
    %v470 = vunpack.c.l.b16 %v399
    %v471 = vunpack.c.l.b16 %v400
    %v472 = vunpack.c.l.b16 %v401
    %v473 = vunpack.c.l.b16 %v402
    %v474 = vunpack.c.l.b16 %v403
    %v475 = vunpack.c.l.b16 %v404
    %v476 = vunpack.c.l.b16 %v405
    %v477 = vunpack.c.l.b16 %v406
    %v478 = vunpack.c.l.b16 %v407
    %v479 = vunpack.c.l.b16 %v408
    %v480 = vunpack.c.l.b16 %v409
    %v481 = vunpack.c.l.b16 %v410
    %v482 = vunpack.c.l.b16 %v411
    %v483 = vunpack.c.l.b16 %v412
    %v484 = vunpack.c.l.b16 %v413
    %v485 = vunpack.c.l.b16 %v414
    %v486 = vunpack.c.l.b16 %v415
    %v487 = vunpack.c.l.b16 %v416
    %v488 = vunpack.c.l.b16 %v417
    %v489 = vunpack.c.l.b16 %v418
    %v490 = vunpack.c.l.b16 %v419
    %v491 = vunpack.c.l.b16 %v420
    %v492 = vunpack.c.l.b16 %v421
    %v493 = vunpack.c.l.b16 %v422
    %v494 = vunpack.c.l.b16 %v423
    %v495 = vunpack.c.l.b16 %v424
    %v496 = vunpack.c.l.b16 %v425
    %v497 = vunpack.c.l.b16 %v426
    %v498 = vpack.c.b16 %v467, %v466
    %v499 = vpack.c.b16 %v469, %v468
    %v500 = vpack.c.b16 %v471, %v470
    %v501 = vpack.c.b16 %v473, %v472
    %v502 = vpack.c.b16 %v475, %v474
    %v503 = vpack.c.b16 %v477, %v476
    %v504 = vpack.c.b16 %v479, %v478
    %v505 = vpack.c.b16 %v481, %v480
    %v506 = vpack.c.b16 %v483, %v482
    %v507 = vpack.c.b16 %v485, %v484
    %v508 = vpack.c.b16 %v487, %v486
    %v509 = vpack.c.b16 %v489, %v488
    %v510 = vpack.c.b16 %v491, %v490
    %v511 = vpack.c.b16 %v493, %v492
    %v512 = vpack.c.b16 %v495, %v494
    %v513 = vpack.c.b16 %v497, %v496
    %530 = vmatprep.subr.bf16.mxu0 0
    %531 = vmatpush1.bf16.msra.mxu0 %v505
    %532 = vmatprep.subr.bf16.mxu0 0
    %533 = vmatpush1.bf16.msra.mxu0 %v504
    %534 = vmatprep.subr.bf16.mxu0 0
    %535 = vmatpush1.bf16.msra.mxu0 %v503
    %536 = vmatprep.subr.bf16.mxu0 0
    %537 = vmatpush1.bf16.msra.mxu0 %v502
    %538 = vmatprep.subr.bf16.mxu0 0
    %539 = vmatpush1.bf16.msra.mxu0 %v501
    %540 = vmatprep.subr.bf16.mxu0 0
    %541 = vmatpush1.bf16.msra.mxu0 %v500
    %542 = vmatprep.subr.bf16.mxu0 0
    %543 = vmatpush1.bf16.msra.mxu0 %v499
    %544 = vmatprep.subr.bf16.mxu0 0
    %545 = vmatpush1.bf16.msra.mxu0 %v498
    %546 = vmatprep.subr.bf16.mxu0 0
    %547 = vmatpush2.bf16.msra.mxu0 %v513
    %548 = vmatprep.subr.bf16.mxu0 0
    %549 = vmatpush2.bf16.msra.mxu0 %v512
    %550 = vmatprep.subr.bf16.mxu0 0
    %551 = vmatpush2.bf16.msra.mxu0 %v511
    %552 = vmatprep.subr.bf16.mxu0 0
    %553 = vmatpush2.bf16.msra.mxu0 %v510
    %554 = vmatprep.subr.bf16.mxu0 0
    %555 = vmatpush2.bf16.msra.mxu0 %v509
    %556 = vmatprep.subr.bf16.mxu0 0
    %557 = vmatpush2.bf16.msra.mxu0 %v508
    %558 = vmatprep.subr.bf16.mxu0 0
    %559 = vmatpush2.bf16.msra.mxu0 %v507
    %560 = vmatprep.subr.bf16.mxu0 0
    %561 = vmatpush2.bf16.msra.mxu0 %v506
    %562 = vmatprep.mubr.bf16.mxu0 %v394
    %563 = vmatmul.mubr.bf16.gmra.mxu0 %v393
    %v564 = vpop.f32.mrf.mxu0
    %v565 = vadd.f32 %v432, %v564
    %v566 = vpop.f32.mrf.mxu0
    %v567 = vpop.f32.mrf.mxu0
    %v568 = vadd.f32 %v432, %v567
    %v569 = vpop.f32.mrf.mxu0
    %570 = vdwg.mxu0
    %v571 = vtanh.pop %v565
    %v572 = vtanh.pop %v568
    %v573 = vld [vmem:[%s7] sm:$0x1]
    %v575 = vlaneseq
    %v576 = vshrl.u32 %v575, 7
    %v577 = vsub.s32 0, %v576
    %v578 = vrot.slane %v573, %v577
    %v580 = vmul.f32 %v571, %v578
    %v581 = vmul.f32 %v572, %v578
    %vm582 = vcmask 523264
    %v583 = vsel %vm582, %v580, 0.0
    %584 = vadd.xlane.f32.xlu0 %v583
    %v585 = vpop.xlane.xlu0 %584
    %v586 = vsel %vm582, %v581, 0.0
    %587 = vadd.xlane.f32.xlu0 %v586
    %v588 = vpop.xlane.xlu0 %587
    %v589 = vld [vmem:[#allocation2] sm:$0x1]
    %v591 = vlaneseq
    %v592 = vshrl.u32 %v591, 7
    %v593 = vsub.s32 0, %v592
    %v594 = vrot.slane %v589, %v593
    %v596 = vadd.f32 %v585, %v594
    %v597 = vadd.f32 %v588, %v594
    %vm598 = vcmask 7168
    %v599 = vsel %vm598, %v596, -inf
    %v600 = vrot.slane %v599, 4
    %v601 = vmax.f32 %v599, %v600
    %v602 = vrot.slane %v601, 2
    %v603 = vmax.f32 %v601, %v602
    %v604 = vrot.slane %v603, 1
    %v605 = vmax.f32 %v603, %v604
    %v606 = vsel %vm598, %v597, -inf
    %v607 = vrot.slane %v606, 4
    %v608 = vmax.f32 %v606, %v607
    %v609 = vrot.slane %v608, 2
    %v610 = vmax.f32 %v608, %v609
    %v611 = vrot.slane %v610, 1
    %v612 = vmax.f32 %v610, %v611
    %v613 = vsub.f32 %v596, %v605
    %v614 = vsub.f32 %v597, %v612
    %v615 = vmul.f32 %v613, 1.442695
    %v616 = vpow.pop %v615
    %v617 = vmul.f32 %v614, 1.442695
    %v618 = vpow.pop %v617
    %620 = vset.pattern.permute.xlu0 0
    %621 = vperm.xlu0 %620, %v616
    %v622 = vpop.permute.xlu0 %621
    %625 = vset.pattern.permute.xlu0 0
    %626 = vperm.xlu0 %625, %v618
    %v627 = vpop.permute.xlu0 %626
    %v629 = vmul.f32 %v622, %v565
    %v630 = vmul.f32 %v627, %v568
    %v631 = vsel %vm89, %v629, 0.0
    %v632 = vrot.slane %v631, 4
    %v633 = vadd.f32 %v631, %v632
    %v634 = vrot.slane %v633, 2
    %v635 = vadd.f32 %v633, %v634
    %v636 = vrot.slane %v635, 1
    %v637 = vadd.f32 %v635, %v636
    %v638 = vsel %vm89, %v630, 0.0
    %v639 = vrot.slane %v638, 4
    %v640 = vadd.f32 %v638, %v639
    %v641 = vrot.slane %v640, 2
    %v642 = vadd.f32 %v640, %v641
    %v643 = vrot.slane %v642, 1
    %v644 = vadd.f32 %v642, %v643
    %v645 = vsel %vm598, %v616, 0.0
    %v646 = vrot.slane %v645, 4
    %v647 = vadd.f32 %v645, %v646
    %v648 = vrot.slane %v647, 2
    %v649 = vadd.f32 %v647, %v648
    %v650 = vrot.slane %v649, 1
    %v651 = vadd.f32 %v649, %v650
    %v652 = vsel %vm598, %v618, 0.0
    %v653 = vrot.slane %v652, 4
    %v654 = vadd.f32 %v652, %v653
    %v655 = vrot.slane %v654, 2
    %v656 = vadd.f32 %v654, %v655
    %v657 = vrot.slane %v656, 1
    %v658 = vadd.f32 %v656, %v657
    %v659 = vadd.f32 %v651, 1e-15
    %v660 = vadd.f32 %v658, 1e-15
    %v661 = vrcp.pop %v659
    %v662 = vrcp.pop %v660
    %664 = vset.pattern.permute.xlu0 0
    %665 = vperm.xlu0 %664, %v661
    %v666 = vpop.permute.xlu0 %665
    %669 = vset.pattern.permute.xlu0 0
    %670 = vperm.xlu0 %669, %v662
    %v671 = vpop.permute.xlu0 %670
    %v673 = vmul.f32 %v637, %v666
    %v674 = vmul.f32 %v644, %v671
    %vm677 = vcmask 1041409
    %v678 = vsel %vm677, %v674, %v673
    %vm680 = vcmask 254976
    %681 = vst.msk [vmem:[#allocation6] sm:$0x3] %vm680, %v678
    // Predicated region
    $region42: #{tpu_custom_call.1} parent=1 // pred_check
      _
    $region43: #{tpu_custom_call.1} parent=1 // pred_check_branch
      %683 = sbr.rel (0) target = $region45
    $region44: #{tpu_custom_call.1} parent=1 // pred_region
      %s685 = ssub.s32 32, 32
      %686 = vsyncadd [#allocation5], %s685
      %s688 = sshll.u32 [#allocation6], 4
      %s689 = int_to_ptr.vmem [resolvable:$true] %s688
      %691 = dma.vmem_to_hbm [thread:$0]  %s689, 32, %s9, [#allocation5]
    $region45: #{tpu_custom_call.1} parent=1 // pred_fallthru
      _
    // Predicated region
    $region46: #{tpu_custom_call.1} parent=1 // pred_check
      _
    $region47: #{tpu_custom_call.1} parent=1 // pred_check_branch
      %693 = sbr.rel (0) target = $region49
    $region48: #{tpu_custom_call.1} parent=1 // pred_region
      %694 = dma.done [#allocation5], 32
    $region49: #{tpu_custom_call.1} parent=1 // pred_fallthru
      _
    %695 = vsyncpa [#allocation4], 1
    %696 = vsyncpa [#allocation5], 1

</llo_original>
